<compile_context>
chip_gen: v6e
topology: v6e:2x2x1
jax: 0.10.0
libtpu: 0.0.40
codegen_flags: <defaults>
</compile_context>

<pallas_src>
import math

import jax
import jax.numpy as jnp
from jax.experimental import pallas as pl
from jax.experimental.pallas import tpu as pltpu


def _round_up(x: int, m: int) -> int:
    return ((x + m - 1) // m) * m


def _build_fixed_table(c_in: int, d_model: int) -> jnp.ndarray:
    """Deterministic sinusoidal table, identical to FixedEmbedding.__init__."""
    assert d_model % 2 == 0, "d_model must be even (stacked sin/cos)"
    position = jnp.arange(c_in, dtype=jnp.float32)[:, None]              # (c_in, 1)
    div_term = jnp.exp(
        jnp.arange(0, d_model, 2, dtype=jnp.float32)
        * -(math.log(10000.0) / d_model)
    )                                                                    # (d_model//2,)
    sin_part = jnp.sin(position * div_term)                              # (c_in, d/2)
    cos_part = jnp.cos(position * div_term)                              # (c_in, d/2)
    # interleave: w[:, 0::2] = sin, w[:, 1::2] = cos
    w = jnp.stack([sin_part, cos_part], axis=-1).reshape(c_in, d_model)
    return w.astype(jnp.float32)


def build_temporal_tables(d_model: int, freq: str = "h"):
    """Fixed tables + the x[..., col] each one indexes (month, day, weekday, hour[, minute])."""
    sizes = [13, 32, 7, 24]           # month, day, weekday, hour
    cols = [0, 1, 2, 3]
    if freq == "t":
        sizes.append(4)               # minute
        cols.append(4)
    tables = [_build_fixed_table(s, d_model) for s in sizes]
    return tables, cols


def temporal_embedding(x_mark: jnp.ndarray, tables, cols, *, tile_tokens: int | None = None):
    """x_mark: (B, L, n_marks) integer time features -> (B, L, d_model) float32."""
    B, L, _ = x_mark.shape
    F = len(tables)
    d_model = tables[0].shape[1]
    n = B * L

    # --- packing factor: P tokens per lane-dense output row when d_model < 128 ---
    P = 128 // d_model if (d_model < 128 and 128 % d_model == 0) else 1
    unit = 8 * P                                   # tokens per 8-sublane output group

    if tile_tokens is None:
        # ~1 MiB of f32 output per grid step to amortize per-step overhead.
        tile_tokens = max(unit, ((1 << 20) // (4 * d_model)) // unit * unit)
    tile_tokens = max(unit, (tile_tokens // unit) * unit)
    tile_tokens = min(tile_tokens, _round_up(n, unit))   # don't over-pad tiny inputs
    n_pad = _round_up(n, tile_tokens)
    rows_total = n_pad // P
    rows_per_step = tile_tokens // P
    grid_steps = n_pad // tile_tokens

    # --- combined vocabulary: per-feature offsets into one concatenated table ---
    sizes = [int(t.shape[0]) for t in tables]
    offsets, acc = [], 0
    for s in sizes:
        offsets.append(acc)
        acc += s
    V = acc
    Vpad = _round_up(V, 128)                       # lane-aligned vocab block

    # --- indices: select features, add offsets, pad, pack P tokens per row ---
    feat = jnp.stack([x_mark[..., c] for c in cols], axis=-1).astype(jnp.int32)   # (B,L,F)
    feat = feat.reshape(n, F) + jnp.asarray(offsets, dtype=jnp.int32)[None, :]
    if n_pad != n:
        feat = jnp.pad(feat, ((0, n_pad - n), (0, 0)))
    idx_packed = feat.reshape(rows_total, P * F)                                  # (rows, P*F)

    # --- table: concat per-feature tables, pad to Vpad rows, block-diag replicate ---
    W = jnp.concatenate(tables, axis=0)                                           # (V, d_model)
    W = jnp.pad(W, ((0, Vpad - V), (0, 0)))                                       # (Vpad, d_model)
    if P > 1:
        Wp = jnp.zeros((P * Vpad, P * d_model), jnp.float32)
        for j in range(P):
            Wp = Wp.at[j * Vpad:(j + 1) * Vpad, j * d_model:(j + 1) * d_model].set(W)
    else:
        Wp = W

    def kernel(idx_ref, w_ref, o_ref, multi_ref):
        # idx_ref:   (rows_per_step, P*F)    int32 offset indices
        # w_ref:     (P*Vpad, P*d_model)     f32 block-diagonal fixed table
        # o_ref:     (rows_per_step, P*d_model) f32 lane-dense packed output
        # multi_ref: (rows_per_step, P*Vpad) f32 multi-hot counts scratch (VMEM)
        ids = idx_ref[...]
        iota_v = jax.lax.broadcasted_iota(jnp.int32, (rows_per_step, Vpad), 1)
        for j in range(P):                       # static unroll: token slot within row
            blk = jnp.zeros((rows_per_step, Vpad), jnp.float32)
            for f in range(F):                   # static unroll: time feature
                c = j * F + f
                blk = blk + (iota_v == ids[:, c:c + 1]).astype(jnp.float32)
            multi_ref[:, j * Vpad:(j + 1) * Vpad] = blk
        o_ref[...] = jnp.dot(
            multi_ref[...], w_ref[...], preferred_element_type=jnp.float32
        ).astype(o_ref.dtype)

    out = pl.pallas_call(
        kernel,
        out_shape=jax.ShapeDtypeStruct((rows_total, P * d_model), jnp.float32),
        grid=(grid_steps,),
        in_specs=[
            pl.BlockSpec((rows_per_step, P * F), lambda i: (i, 0)),        # index tile
            pl.BlockSpec((P * Vpad, P * d_model), lambda i: (0, 0)),       # full table
        ],
        out_specs=pl.BlockSpec((rows_per_step, P * d_model), lambda i: (i, 0)),
        scratch_shapes=[pltpu.VMEM((rows_per_step, P * Vpad), jnp.float32)],
        compiler_params=pltpu.CompilerParams(
            dimension_semantics=("parallel",),
        ),
    )(idx_packed, Wp)

    # Free row-major unpack: row r lanes [j*d:(j+1)*d] == token r*P+j.
    return out.reshape(n_pad, d_model)[:n].reshape(B, L, d_model)


if __name__ == "__main__":
    # Small shapes consistent with the module: x is (batch, seq, n_marks) of
    # integer time features [month, day, weekday, hour, minute]; hidden d_model.
    d_model = 32
    B, L = 2, 8
    freq = "h"   # default TemporalEmbedding config (minute table unused)

    tables, cols = build_temporal_tables(d_model, freq=freq)

    key = jax.random.PRNGKey(0)
    keys = jax.random.split(key, 5)
    month   = jax.random.randint(keys[0], (B, L), 0, 13, dtype=jnp.int32)
    day     = jax.random.randint(keys[1], (B, L), 0, 32, dtype=jnp.int32)
    weekday = jax.random.randint(keys[2], (B, L), 0, 7,  dtype=jnp.int32)
    hour    = jax.random.randint(keys[3], (B, L), 0, 24, dtype=jnp.int32)
    minute  = jax.random.randint(keys[4], (B, L), 0, 4,  dtype=jnp.int32)
    x = jnp.stack([month, day, weekday, hour, minute], axis=-1)   # (B, L, 5)

    out = temporal_embedding(x, tables, cols)
    out = jax.block_until_ready(out)

    # Reference: plain sum of fixed-embedding lookups (detached / non-trainable in torch).
    ref = sum(tables[k][x[..., cols[k]]] for k in range(len(tables)))

    assert out.shape == (B, L, d_model)
    assert out.dtype == jnp.float32
    assert jnp.allclose(out, ref, atol=1e-5, rtol=1e-5), float(jnp.max(jnp.abs(out - ref)))

    print("KERNEL_OK")
</pallas_src>

<mosaic_0001>
module attributes {stable_mosaic.version = 11 : i64} {
  func.func @kernel(%arg0: i32, %arg1: memref<8x16xi32, #tpu.memory_space<vmem>>, %arg2: memref<512x128xf32, #tpu.memory_space<vmem>>, %arg3: memref<8x128xf32, #tpu.memory_space<vmem>>, %arg4: memref<8x512xf32, #tpu.memory_space<vmem>>) attributes {dimension_semantics = [#tpu.dimension_semantics<parallel>], iteration_bounds = array<i64: 1>, scalar_prefetch = 0 : i64, scratch_operands = 1 : i64, tpu.core_type = #tpu.core_type<tc>, window_params = [{transform_indices = @transform_0, window_bounds = array<i64: 8, 16>}, {pipeline_mode = #tpu.pipeline_mode<synchronous>, transform_indices = @transform_1, window_bounds = array<i64: 512, 128>}, {transform_indices = @transform_2, window_bounds = array<i64: 8, 128>}]} {
    %c0 = arith.constant 0 : index
    %c0_0 = arith.constant 0 : index
    %0 = vector.load %arg1[%c0, %c0_0] : memref<8x16xi32, #tpu.memory_space<vmem>>, vector<8x16xi32>
    %1 = tpu.iota {dimensions = array<i32: 1>} : vector<8x128xi32>
    %cst = arith.constant 0.000000e+00 : f32
    %2 = vector.broadcast %cst : f32 to vector<8x128xf32>
    %3 = vector.extract_strided_slice %0 {offsets = [0, 0], sizes = [8, 1], strides = [1, 1]} : vector<8x16xi32> to vector<8x1xi32>
    %4 = vector.broadcast %3 : vector<8x1xi32> to vector<8x128xi32>
    %5 = arith.cmpi eq, %1, %4 : vector<8x128xi32>
    %6 = arith.extui %5 : vector<8x128xi1> to vector<8x128xi32>
    %7 = arith.sitofp %6 : vector<8x128xi32> to vector<8x128xf32>
    %8 = arith.addf %2, %7 : vector<8x128xf32>
    %9 = vector.extract_strided_slice %0 {offsets = [0, 1], sizes = [8, 1], strides = [1, 1]} : vector<8x16xi32> to vector<8x1xi32>
    %10 = vector.broadcast %9 : vector<8x1xi32> to vector<8x128xi32>
    %11 = arith.cmpi eq, %1, %10 : vector<8x128xi32>
    %12 = arith.extui %11 : vector<8x128xi1> to vector<8x128xi32>
    %13 = arith.sitofp %12 : vector<8x128xi32> to vector<8x128xf32>
    %14 = arith.addf %8, %13 : vector<8x128xf32>
    %15 = vector.extract_strided_slice %0 {offsets = [0, 2], sizes = [8, 1], strides = [1, 1]} : vector<8x16xi32> to vector<8x1xi32>
    %16 = vector.broadcast %15 : vector<8x1xi32> to vector<8x128xi32>
    %17 = arith.cmpi eq, %1, %16 : vector<8x128xi32>
    %18 = arith.extui %17 : vector<8x128xi1> to vector<8x128xi32>
    %19 = arith.sitofp %18 : vector<8x128xi32> to vector<8x128xf32>
    %20 = arith.addf %14, %19 : vector<8x128xf32>
    %21 = vector.extract_strided_slice %0 {offsets = [0, 3], sizes = [8, 1], strides = [1, 1]} : vector<8x16xi32> to vector<8x1xi32>
    %22 = vector.broadcast %21 : vector<8x1xi32> to vector<8x128xi32>
    %23 = arith.cmpi eq, %1, %22 : vector<8x128xi32>
    %24 = arith.extui %23 : vector<8x128xi1> to vector<8x128xi32>
    %25 = arith.sitofp %24 : vector<8x128xi32> to vector<8x128xf32>
    %26 = arith.addf %20, %25 : vector<8x128xf32>
    %c0_1 = arith.constant 0 : index
    %c0_2 = arith.constant 0 : index
    %27 = vector.load %arg4[%c0_1, %c0_2] : memref<8x512xf32, #tpu.memory_space<vmem>>, vector<8x128xf32>
    tpu.vector_store %arg4[%c0_1, %c0_2], %26 {strides = array<i32>} : memref<8x512xf32, #tpu.memory_space<vmem>>, vector<8x128xf32>,
    %cst_3 = arith.constant 0.000000e+00 : f32
    %28 = vector.broadcast %cst_3 : f32 to vector<8x128xf32>
    %29 = vector.extract_strided_slice %0 {offsets = [0, 4], sizes = [8, 1], strides = [1, 1]} : vector<8x16xi32> to vector<8x1xi32>
    %30 = vector.broadcast %29 : vector<8x1xi32> to vector<8x128xi32>
    %31 = arith.cmpi eq, %1, %30 : vector<8x128xi32>
    %32 = arith.extui %31 : vector<8x128xi1> to vector<8x128xi32>
    %33 = arith.sitofp %32 : vector<8x128xi32> to vector<8x128xf32>
    %34 = arith.addf %28, %33 : vector<8x128xf32>
    %35 = vector.extract_strided_slice %0 {offsets = [0, 5], sizes = [8, 1], strides = [1, 1]} : vector<8x16xi32> to vector<8x1xi32>
    %36 = vector.broadcast %35 : vector<8x1xi32> to vector<8x128xi32>
    %37 = arith.cmpi eq, %1, %36 : vector<8x128xi32>
    %38 = arith.extui %37 : vector<8x128xi1> to vector<8x128xi32>
    %39 = arith.sitofp %38 : vector<8x128xi32> to vector<8x128xf32>
    %40 = arith.addf %34, %39 : vector<8x128xf32>
    %41 = vector.extract_strided_slice %0 {offsets = [0, 6], sizes = [8, 1], strides = [1, 1]} : vector<8x16xi32> to vector<8x1xi32>
    %42 = vector.broadcast %41 : vector<8x1xi32> to vector<8x128xi32>
    %43 = arith.cmpi eq, %1, %42 : vector<8x128xi32>
    %44 = arith.extui %43 : vector<8x128xi1> to vector<8x128xi32>
    %45 = arith.sitofp %44 : vector<8x128xi32> to vector<8x128xf32>
    %46 = arith.addf %40, %45 : vector<8x128xf32>
    %47 = vector.extract_strided_slice %0 {offsets = [0, 7], sizes = [8, 1], strides = [1, 1]} : vector<8x16xi32> to vector<8x1xi32>
    %48 = vector.broadcast %47 : vector<8x1xi32> to vector<8x128xi32>
    %49 = arith.cmpi eq, %1, %48 : vector<8x128xi32>
    %50 = arith.extui %49 : vector<8x128xi1> to vector<8x128xi32>
    %51 = arith.sitofp %50 : vector<8x128xi32> to vector<8x128xf32>
    %52 = arith.addf %46, %51 : vector<8x128xf32>
    %c0_4 = arith.constant 0 : index
    %c128 = arith.constant 128 : index
    %53 = vector.load %arg4[%c0_4, %c128] : memref<8x512xf32, #tpu.memory_space<vmem>>, vector<8x128xf32>
    tpu.vector_store %arg4[%c0_4, %c128], %52 {strides = array<i32>} : memref<8x512xf32, #tpu.memory_space<vmem>>, vector<8x128xf32>,
    %cst_5 = arith.constant 0.000000e+00 : f32
    %54 = vector.broadcast %cst_5 : f32 to vector<8x128xf32>
    %55 = vector.extract_strided_slice %0 {offsets = [0, 8], sizes = [8, 1], strides = [1, 1]} : vector<8x16xi32> to vector<8x1xi32>
    %56 = vector.broadcast %55 : vector<8x1xi32> to vector<8x128xi32>
    %57 = arith.cmpi eq, %1, %56 : vector<8x128xi32>
    %58 = arith.extui %57 : vector<8x128xi1> to vector<8x128xi32>
    %59 = arith.sitofp %58 : vector<8x128xi32> to vector<8x128xf32>
    %60 = arith.addf %54, %59 : vector<8x128xf32>
    %61 = vector.extract_strided_slice %0 {offsets = [0, 9], sizes = [8, 1], strides = [1, 1]} : vector<8x16xi32> to vector<8x1xi32>
    %62 = vector.broadcast %61 : vector<8x1xi32> to vector<8x128xi32>
    %63 = arith.cmpi eq, %1, %62 : vector<8x128xi32>
    %64 = arith.extui %63 : vector<8x128xi1> to vector<8x128xi32>
    %65 = arith.sitofp %64 : vector<8x128xi32> to vector<8x128xf32>
    %66 = arith.addf %60, %65 : vector<8x128xf32>
    %67 = vector.extract_strided_slice %0 {offsets = [0, 10], sizes = [8, 1], strides = [1, 1]} : vector<8x16xi32> to vector<8x1xi32>
    %68 = vector.broadcast %67 : vector<8x1xi32> to vector<8x128xi32>
    %69 = arith.cmpi eq, %1, %68 : vector<8x128xi32>
    %70 = arith.extui %69 : vector<8x128xi1> to vector<8x128xi32>
    %71 = arith.sitofp %70 : vector<8x128xi32> to vector<8x128xf32>
    %72 = arith.addf %66, %71 : vector<8x128xf32>
    %73 = vector.extract_strided_slice %0 {offsets = [0, 11], sizes = [8, 1], strides = [1, 1]} : vector<8x16xi32> to vector<8x1xi32>
    %74 = vector.broadcast %73 : vector<8x1xi32> to vector<8x128xi32>
    %75 = arith.cmpi eq, %1, %74 : vector<8x128xi32>
    %76 = arith.extui %75 : vector<8x128xi1> to vector<8x128xi32>
    %77 = arith.sitofp %76 : vector<8x128xi32> to vector<8x128xf32>
    %78 = arith.addf %72, %77 : vector<8x128xf32>
    %c0_6 = arith.constant 0 : index
    %c256 = arith.constant 256 : index
    %79 = vector.load %arg4[%c0_6, %c256] : memref<8x512xf32, #tpu.memory_space<vmem>>, vector<8x128xf32>
    tpu.vector_store %arg4[%c0_6, %c256], %78 {strides = array<i32>} : memref<8x512xf32, #tpu.memory_space<vmem>>, vector<8x128xf32>,
    %cst_7 = arith.constant 0.000000e+00 : f32
    %80 = vector.broadcast %cst_7 : f32 to vector<8x128xf32>
    %81 = vector.extract_strided_slice %0 {offsets = [0, 12], sizes = [8, 1], strides = [1, 1]} : vector<8x16xi32> to vector<8x1xi32>
    %82 = vector.broadcast %81 : vector<8x1xi32> to vector<8x128xi32>
    %83 = arith.cmpi eq, %1, %82 : vector<8x128xi32>
    %84 = arith.extui %83 : vector<8x128xi1> to vector<8x128xi32>
    %85 = arith.sitofp %84 : vector<8x128xi32> to vector<8x128xf32>
    %86 = arith.addf %80, %85 : vector<8x128xf32>
    %87 = vector.extract_strided_slice %0 {offsets = [0, 13], sizes = [8, 1], strides = [1, 1]} : vector<8x16xi32> to vector<8x1xi32>
    %88 = vector.broadcast %87 : vector<8x1xi32> to vector<8x128xi32>
    %89 = arith.cmpi eq, %1, %88 : vector<8x128xi32>
    %90 = arith.extui %89 : vector<8x128xi1> to vector<8x128xi32>
    %91 = arith.sitofp %90 : vector<8x128xi32> to vector<8x128xf32>
    %92 = arith.addf %86, %91 : vector<8x128xf32>
    %93 = vector.extract_strided_slice %0 {offsets = [0, 14], sizes = [8, 1], strides = [1, 1]} : vector<8x16xi32> to vector<8x1xi32>
    %94 = vector.broadcast %93 : vector<8x1xi32> to vector<8x128xi32>
    %95 = arith.cmpi eq, %1, %94 : vector<8x128xi32>
    %96 = arith.extui %95 : vector<8x128xi1> to vector<8x128xi32>
    %97 = arith.sitofp %96 : vector<8x128xi32> to vector<8x128xf32>
    %98 = arith.addf %92, %97 : vector<8x128xf32>
    %99 = vector.extract_strided_slice %0 {offsets = [0, 15], sizes = [8, 1], strides = [1, 1]} : vector<8x16xi32> to vector<8x1xi32>
    %100 = vector.broadcast %99 : vector<8x1xi32> to vector<8x128xi32>
    %101 = arith.cmpi eq, %1, %100 : vector<8x128xi32>
    %102 = arith.extui %101 : vector<8x128xi1> to vector<8x128xi32>
    %103 = arith.sitofp %102 : vector<8x128xi32> to vector<8x128xf32>
    %104 = arith.addf %98, %103 : vector<8x128xf32>
    %c0_8 = arith.constant 0 : index
    %c384 = arith.constant 384 : index
    %105 = vector.load %arg4[%c0_8, %c384] : memref<8x512xf32, #tpu.memory_space<vmem>>, vector<8x128xf32>
    tpu.vector_store %arg4[%c0_8, %c384], %104 {strides = array<i32>} : memref<8x512xf32, #tpu.memory_space<vmem>>, vector<8x128xf32>,
    %c0_9 = arith.constant 0 : index
    %c0_10 = arith.constant 0 : index
    %106 = vector.load %arg4[%c0_9, %c0_10] : memref<8x512xf32, #tpu.memory_space<vmem>>, vector<8x512xf32>
    %c0_11 = arith.constant 0 : index
    %c0_12 = arith.constant 0 : index
    %107 = vector.load %arg2[%c0_11, %c0_12] : memref<512x128xf32, #tpu.memory_space<vmem>>, vector<512x128xf32>
    %cst_13 = arith.constant dense<0.000000e+00> : vector<8x128xf32>
    %108 = tpu.matmul %106, %107, %cst_13 {dimension_numbers = #tpu.dot_dimension_numbers<[1], [0], [0], [1], [0, 0, 1, 1], [], []>} : vector<8x512xf32>, vector<512x128xf32>, vector<8x128xf32> -> vector<8x128xf32>
    %c0_14 = arith.constant 0 : index
    %c0_15 = arith.constant 0 : index
    %109 = vector.load %arg3[%c0_14, %c0_15] : memref<8x128xf32, #tpu.memory_space<vmem>>, vector<8x128xf32>
    tpu.vector_store %arg3[%c0_14, %c0_15], %108 {strides = array<i32>} : memref<8x128xf32, #tpu.memory_space<vmem>>, vector<8x128xf32>,
    return
  }
  func.func @transform_0(%arg0: i32) -> (i32, i32) {
    %c0_i32 = arith.constant 0 : i32
    %c0_i32_0 = arith.constant 0 : i32
    return %arg0, %c0_i32 : i32, i32
  }
  func.func @transform_1(%arg0: i32) -> (i32, i32) {
    %c0_i32 = arith.constant 0 : i32
    %c0_i32_0 = arith.constant 0 : i32
    %c0_i32_1 = arith.constant 0 : i32
    return %c0_i32, %c0_i32_0 : i32, i32
  }
  func.func @transform_2(%arg0: i32) -> (i32, i32) {
    %c0_i32 = arith.constant 0 : i32
    %c0_i32_0 = arith.constant 0 : i32
    return %arg0, %c0_i32 : i32, i32
  }
}

</mosaic_0001>

<llo_original>
// kernel: tpu_custom_call.1
$region0: #{tpu_custom_call.1}
  #allocation0 [shape = 'u32[]', space=smem, size = 0x4, offset = 0x4, fixed_abs, tag = 'smem constant byte address 0x4 - core index']
  #allocation1 [shape = 'u32[144,128]{1,0:T(1,128)}', space=vmem, size = 0x12000, scoped, tag = 'internal scratch']
  #allocation2 [shape = 'f32[8,512]{1,0:T(8,128)}', space=vmem, size = 0x4000, scoped, tag = 'scratch operand']
  %s0 = inlined_call_operand.hbm [shape: s32[8,16], index: 0, kind: input, shape index: {}]
  %s1 = inlined_call_operand.hbm [shape: f32[512,128], index: 1, kind: input, shape index: {}]
  %s2 = inlined_call_operand.hbm [shape: f32[8,128], index: 2, kind: output, shape index: {}]
  %s3 = sld [smem:[#allocation0]]
  $region26: #{tpu_custom_call.1} parent=0
    _
  %s5 = ssub.s32 1, %s3
  %s6 = scalar_select 0, %s5, %s3
  $region1: #{tpu_custom_call.1} parent=0
    #allocation3 [shape = 'u8[4096]{0}', space=vmem, size = 0x1000, scoped, tag = 'input window, operand 0, single buffered']
    #allocation4 [shape = 's32[1]{0}', space=sflag, size = 0x4, scoped, tag = 'scoped memory for tpu_custom_call.1']
    #allocation5 [shape = 's32[1]{0}', space=sflag, size = 0x4, scoped, tag = 'scoped memory for tpu_custom_call.1']
    #allocation6 [shape = 'u8[262144]{0}', space=vmem, size = 0x40000, scoped, tag = 'input window, operand 1, single buffered']
    #allocation7 [shape = 's32[1]{0}', space=sflag, size = 0x4, scoped, tag = 'scoped memory for tpu_custom_call.1']
    #allocation8 [shape = 'u8[4096]{0}', space=vmem, size = 0x1000, scoped, tag = 'output window, operand 0, single buffered']
    %7 = vsyncpa [#allocation4], 0
    %8 = vsyncpa [#allocation7], 0
    %9 = vsyncpa [#allocation5], 0
    // Predicated region
    $region2: #{tpu_custom_call.1} parent=1 // pred_check
      _
    $region3: #{tpu_custom_call.1} parent=1 // pred_check_branch
      %11 = sbr.rel (0) target = $region5
    $region4: #{tpu_custom_call.1} parent=1 // pred_region
      %s13 = ssub.s32 128, 128
      %14 = vsyncadd [#allocation4], %s13
      %s16 = sshll.u32 [#allocation3], 4
      %s17 = int_to_ptr.vmem [resolvable:$true] %s16
      %19 = dma.hbm_to_vmem [thread:$0]  %s0, 128, %s17, [#allocation4]
    $region5: #{tpu_custom_call.1} parent=1 // pred_fallthru
      _
    // Predicated region
    $region6: #{tpu_custom_call.1} parent=1 // pred_check
      _
    $region7: #{tpu_custom_call.1} parent=1 // pred_check_branch
      %21 = sbr.rel (0) target = $region9
    $region8: #{tpu_custom_call.1} parent=1 // pred_region
      %s23 = ssub.s32 8192, 8192
      %24 = vsyncadd [#allocation7], %s23
      %s25 = sshll.u32 [#allocation6], 4
      %s26 = int_to_ptr.vmem [resolvable:$true] %s25
      %31 = dma.hbm_to_vmem [thread:$0]  %s1, 8192, %s26, [#allocation7], 128, 128, 8
    $region9: #{tpu_custom_call.1} parent=1 // pred_fallthru
      _
    // Predicated region
    $region10: #{tpu_custom_call.1} parent=1 // pred_check
      _
    $region11: #{tpu_custom_call.1} parent=1 // pred_check_branch
      %33 = sbr.rel (0) target = $region13
    $region12: #{tpu_custom_call.1} parent=1 // pred_region
      %34 = dma.done [#allocation4], 128
    $region13: #{tpu_custom_call.1} parent=1 // pred_fallthru
      _
    // Predicated region
    $region14: #{tpu_custom_call.1} parent=1 // pred_check
      _
    $region15: #{tpu_custom_call.1} parent=1 // pred_check_branch
      %36 = sbr.rel (0) target = $region17
    $region16: #{tpu_custom_call.1} parent=1 // pred_region
      %37 = dma.done [#allocation7], 8192
    $region17: #{tpu_custom_call.1} parent=1 // pred_fallthru
      _
    %v38 = vld [vmem:[#allocation3] sm:$0xff]
    %v39 = vlaneseq
    %v40 = vand.u32 %v39, 127
    %41 = vset.pattern.permute.xlu0 0
    %42 = vperm.xlu0 %41, %v38
    %v43 = vpop.permute.xlu0 %42
    %vm44 = vcmp.eq.s32.totalorder %v40, %v43
    %v45 = vsel %vm44, 1, 0
    %v46 = vcvt.s32.f32 %v45
    %v47 = vadd.f32 %v46, 0.0
    %48 = vset.pattern.permute.xlu0 1
    %49 = vperm.xlu0 %48, %v38
    %v50 = vpop.permute.xlu0 %49
    %vm51 = vcmp.eq.s32.totalorder %v40, %v50
    %v52 = vsel %vm51, 1, 0
    %v53 = vcvt.s32.f32 %v52
    %v54 = vadd.f32 %v47, %v53
    %55 = vset.pattern.permute.xlu0 2
    %56 = vperm.xlu0 %55, %v38
    %v57 = vpop.permute.xlu0 %56
    %vm58 = vcmp.eq.s32.totalorder %v40, %v57
    %v59 = vsel %vm58, 1, 0
    %v60 = vcvt.s32.f32 %v59
    %v61 = vadd.f32 %v54, %v60
    %62 = vset.pattern.permute.xlu0 3
    %63 = vperm.xlu0 %62, %v38
    %v64 = vpop.permute.xlu0 %63
    %vm65 = vcmp.eq.s32.totalorder %v40, %v64
    %v66 = vsel %vm65, 1, 0
    %v67 = vcvt.s32.f32 %v66
    %v68 = vadd.f32 %v61, %v67
    %69 = vst [vmem:[#allocation2] sm:$0xff] %v68
    %70 = vset.pattern.permute.xlu0 4
    %71 = vperm.xlu0 %70, %v38
    %v72 = vpop.permute.xlu0 %71
    %vm73 = vcmp.eq.s32.totalorder %v40, %v72
    %v74 = vsel %vm73, 1, 0
    %v75 = vcvt.s32.f32 %v74
    %v76 = vadd.f32 %v75, 0.0
    %77 = vset.pattern.permute.xlu0 5
    %78 = vperm.xlu0 %77, %v38
    %v79 = vpop.permute.xlu0 %78
    %vm80 = vcmp.eq.s32.totalorder %v40, %v79
    %v81 = vsel %vm80, 1, 0
    %v82 = vcvt.s32.f32 %v81
    %v83 = vadd.f32 %v76, %v82
    %84 = vset.pattern.permute.xlu0 6
    %85 = vperm.xlu0 %84, %v38
    %v86 = vpop.permute.xlu0 %85
    %vm87 = vcmp.eq.s32.totalorder %v40, %v86
    %v88 = vsel %vm87, 1, 0
    %v89 = vcvt.s32.f32 %v88
    %v90 = vadd.f32 %v83, %v89
    %91 = vset.pattern.permute.xlu0 7
    %92 = vperm.xlu0 %91, %v38
    %v93 = vpop.permute.xlu0 %92
    %vm94 = vcmp.eq.s32.totalorder %v40, %v93
    %v95 = vsel %vm94, 1, 0
    %v96 = vcvt.s32.f32 %v95
    %v97 = vadd.f32 %v90, %v96
    %98 = vst [vmem:[#allocation2 + $0x8] sm:$0xff] %v97
    %99 = vset.pattern.permute.xlu0 8
    %100 = vperm.xlu0 %99, %v38
    %v101 = vpop.permute.xlu0 %100
    %vm102 = vcmp.eq.s32.totalorder %v40, %v101
    %v103 = vsel %vm102, 1, 0
    %v104 = vcvt.s32.f32 %v103
    %v105 = vadd.f32 %v104, 0.0
    %106 = vset.pattern.permute.xlu0 9
    %107 = vperm.xlu0 %106, %v38
    %v108 = vpop.permute.xlu0 %107
    %vm109 = vcmp.eq.s32.totalorder %v40, %v108
    %v110 = vsel %vm109, 1, 0
    %v111 = vcvt.s32.f32 %v110
    %v112 = vadd.f32 %v105, %v111
    %113 = vset.pattern.permute.xlu0 10
    %114 = vperm.xlu0 %113, %v38
    %v115 = vpop.permute.xlu0 %114
    %vm116 = vcmp.eq.s32.totalorder %v40, %v115
    %v117 = vsel %vm116, 1, 0
    %v118 = vcvt.s32.f32 %v117
    %v119 = vadd.f32 %v112, %v118
    %120 = vset.pattern.permute.xlu0 11
    %121 = vperm.xlu0 %120, %v38
    %v122 = vpop.permute.xlu0 %121
    %vm123 = vcmp.eq.s32.totalorder %v40, %v122
    %v124 = vsel %vm123, 1, 0
    %v125 = vcvt.s32.f32 %v124
    %v126 = vadd.f32 %v119, %v125
    %127 = vst [vmem:[#allocation2 + $0x10] sm:$0xff] %v126
    %128 = vset.pattern.permute.xlu0 12
    %129 = vperm.xlu0 %128, %v38
    %v130 = vpop.permute.xlu0 %129
    %vm131 = vcmp.eq.s32.totalorder %v40, %v130
    %v132 = vsel %vm131, 1, 0
    %v133 = vcvt.s32.f32 %v132
    %v134 = vadd.f32 %v133, 0.0
    %135 = vset.pattern.permute.xlu0 13
    %136 = vperm.xlu0 %135, %v38
    %v137 = vpop.permute.xlu0 %136
    %vm138 = vcmp.eq.s32.totalorder %v40, %v137
    %v139 = vsel %vm138, 1, 0
    %v140 = vcvt.s32.f32 %v139
    %v141 = vadd.f32 %v134, %v140
    %142 = vset.pattern.permute.xlu0 14
    %143 = vperm.xlu0 %142, %v38
    %v144 = vpop.permute.xlu0 %143
    %vm145 = vcmp.eq.s32.totalorder %v40, %v144
    %v146 = vsel %vm145, 1, 0
    %v147 = vcvt.s32.f32 %v146
    %v148 = vadd.f32 %v141, %v147
    %149 = vset.pattern.permute.xlu0 15
    %150 = vperm.xlu0 %149, %v38
    %v151 = vpop.permute.xlu0 %150
    %vm152 = vcmp.eq.s32.totalorder %v40, %v151
    %v153 = vsel %vm152, 1, 0
    %v154 = vcvt.s32.f32 %v153
    %v155 = vadd.f32 %v148, %v154
    %156 = vst [vmem:[#allocation2 + $0x18] sm:$0xff] %v155
    %v157 = vld [vmem:[#allocation2] sm:$0xff]
    %v158 = vld [vmem:[#allocation2 + $0x8] sm:$0xff]
    %v159 = vld [vmem:[#allocation2 + $0x10] sm:$0xff]
    %v160 = vld [vmem:[#allocation2 + $0x18] sm:$0xff]
    %v161 = vld [vmem:[#allocation6] sm:$0xff]
    %v162 = vld [vmem:[#allocation6 + $0x8] sm:$0xff]
    %v163 = vld [vmem:[#allocation6 + $0x10] sm:$0xff]
    %v164 = vld [vmem:[#allocation6 + $0x18] sm:$0xff]
    %v165 = vld [vmem:[#allocation6 + $0x20] sm:$0xff]
    %v166 = vld [vmem:[#allocation6 + $0x28] sm:$0xff]
    %v167 = vld [vmem:[#allocation6 + $0x30] sm:$0xff]
    %v168 = vld [vmem:[#allocation6 + $0x38] sm:$0xff]
    %v169 = vld [vmem:[#allocation6 + $0x40] sm:$0xff]
    %v170 = vld [vmem:[#allocation6 + $0x48] sm:$0xff]
    %v171 = vld [vmem:[#allocation6 + $0x50] sm:$0xff]
    %v172 = vld [vmem:[#allocation6 + $0x58] sm:$0xff]
    %v173 = vld [vmem:[#allocation6 + $0x60] sm:$0xff]
    %v174 = vld [vmem:[#allocation6 + $0x68] sm:$0xff]
    %v175 = vld [vmem:[#allocation6 + $0x70] sm:$0xff]
    %v176 = vld [vmem:[#allocation6 + $0x78] sm:$0xff]
    %v177 = vld [vmem:[#allocation6 + $0x80] sm:$0xff]
    %v178 = vld [vmem:[#allocation6 + $0x88] sm:$0xff]
    %v179 = vld [vmem:[#allocation6 + $0x90] sm:$0xff]
    %v180 = vld [vmem:[#allocation6 + $0x98] sm:$0xff]
    %v181 = vld [vmem:[#allocation6 + $0xa0] sm:$0xff]
    %v182 = vld [vmem:[#allocation6 + $0xa8] sm:$0xff]
    %v183 = vld [vmem:[#allocation6 + $0xb0] sm:$0xff]
    %v184 = vld [vmem:[#allocation6 + $0xb8] sm:$0xff]
    %v185 = vld [vmem:[#allocation6 + $0xc0] sm:$0xff]
    %v186 = vld [vmem:[#allocation6 + $0xc8] sm:$0xff]
    %v187 = vld [vmem:[#allocation6 + $0xd0] sm:$0xff]
    %v188 = vld [vmem:[#allocation6 + $0xd8] sm:$0xff]
    %v189 = vld [vmem:[#allocation6 + $0xe0] sm:$0xff]
    %v190 = vld [vmem:[#allocation6 + $0xe8] sm:$0xff]
    %v191 = vld [vmem:[#allocation6 + $0xf0] sm:$0xff]
    %v192 = vld [vmem:[#allocation6 + $0xf8] sm:$0xff]
    %v193 = vld [vmem:[#allocation6 + $0x100] sm:$0xff]
    %v194 = vld [vmem:[#allocation6 + $0x108] sm:$0xff]
    %v195 = vld [vmem:[#allocation6 + $0x110] sm:$0xff]
    %v196 = vld [vmem:[#allocation6 + $0x118] sm:$0xff]
    %v197 = vld [vmem:[#allocation6 + $0x120] sm:$0xff]
    %v198 = vld [vmem:[#allocation6 + $0x128] sm:$0xff]
    %v199 = vld [vmem:[#allocation6 + $0x130] sm:$0xff]
    %v200 = vld [vmem:[#allocation6 + $0x138] sm:$0xff]
    %v201 = vld [vmem:[#allocation6 + $0x140] sm:$0xff]
    %v202 = vld [vmem:[#allocation6 + $0x148] sm:$0xff]
    %v203 = vld [vmem:[#allocation6 + $0x150] sm:$0xff]
    %v204 = vld [vmem:[#allocation6 + $0x158] sm:$0xff]
    %v205 = vld [vmem:[#allocation6 + $0x160] sm:$0xff]
    %v206 = vld [vmem:[#allocation6 + $0x168] sm:$0xff]
    %v207 = vld [vmem:[#allocation6 + $0x170] sm:$0xff]
    %v208 = vld [vmem:[#allocation6 + $0x178] sm:$0xff]
    %v209 = vld [vmem:[#allocation6 + $0x180] sm:$0xff]
    %v210 = vld [vmem:[#allocation6 + $0x188] sm:$0xff]
    %v211 = vld [vmem:[#allocation6 + $0x190] sm:$0xff]
    %v212 = vld [vmem:[#allocation6 + $0x198] sm:$0xff]
    %v213 = vld [vmem:[#allocation6 + $0x1a0] sm:$0xff]
    %v214 = vld [vmem:[#allocation6 + $0x1a8] sm:$0xff]
    %v215 = vld [vmem:[#allocation6 + $0x1b0] sm:$0xff]
    %v216 = vld [vmem:[#allocation6 + $0x1b8] sm:$0xff]
    %v217 = vld [vmem:[#allocation6 + $0x1c0] sm:$0xff]
    %v218 = vld [vmem:[#allocation6 + $0x1c8] sm:$0xff]
    %v219 = vld [vmem:[#allocation6 + $0x1d0] sm:$0xff]
    %v220 = vld [vmem:[#allocation6 + $0x1d8] sm:$0xff]
    %v221 = vld [vmem:[#allocation6 + $0x1e0] sm:$0xff]
    %v222 = vld [vmem:[#allocation6 + $0x1e8] sm:$0xff]
    %v223 = vld [vmem:[#allocation6 + $0x1f0] sm:$0xff]
    %v224 = vld [vmem:[#allocation6 + $0x1f8] sm:$0xff]
    %225 = vmatprep.subr.mxu0 0.0
    %226 = vmatpush1.msra.mxu0 %v176
    %227 = vmatprep.subr.mxu0 0.0
    %228 = vmatpush1.msra.mxu0 %v175
    %229 = vmatprep.subr.mxu0 0.0
    %230 = vmatpush1.msra.mxu0 %v174
    %231 = vmatprep.subr.mxu0 0.0
    %232 = vmatpush1.msra.mxu0 %v173
    %233 = vmatprep.subr.mxu0 0.0
    %234 = vmatpush1.msra.mxu0 %v172
    %235 = vmatprep.subr.mxu0 0.0
    %236 = vmatpush1.msra.mxu0 %v171
    %237 = vmatprep.subr.mxu0 0.0
    %238 = vmatpush1.msra.mxu0 %v170
    %239 = vmatprep.subr.mxu0 0.0
    %240 = vmatpush1.msra.mxu0 %v169
    %241 = vmatprep.subr.mxu0 0.0
    %242 = vmatpush1.msra.mxu0 %v168
    %243 = vmatprep.subr.mxu0 0.0
    %244 = vmatpush1.msra.mxu0 %v167
    %245 = vmatprep.subr.mxu0 0.0
    %246 = vmatpush1.msra.mxu0 %v166
    %247 = vmatprep.subr.mxu0 0.0
    %248 = vmatpush1.msra.mxu0 %v165
    %249 = vmatprep.subr.mxu0 0.0
    %250 = vmatpush1.msra.mxu0 %v164
    %251 = vmatprep.subr.mxu0 0.0
    %252 = vmatpush1.msra.mxu0 %v163
    %253 = vmatprep.subr.mxu0 0.0
    %254 = vmatpush1.msra.mxu0 %v162
    %255 = vmatprep.subr.mxu0 0.0
    %256 = vmatpush1.msra.mxu0 %v161
    %257 = vmatprep.subr.mxu0 0.0
    %258 = vmatpush2.msra.mxu0 %v192
    %259 = vmatprep.subr.mxu0 0.0
    %260 = vmatpush2.msra.mxu0 %v191
    %261 = vmatprep.subr.mxu0 0.0
    %262 = vmatpush2.msra.mxu0 %v190
    %263 = vmatprep.subr.mxu0 0.0
    %264 = vmatpush2.msra.mxu0 %v189
    %265 = vmatprep.subr.mxu0 0.0
    %266 = vmatpush2.msra.mxu0 %v188
    %267 = vmatprep.subr.mxu0 0.0
    %268 = vmatpush2.msra.mxu0 %v187
    %269 = vmatprep.subr.mxu0 0.0
    %270 = vmatpush2.msra.mxu0 %v186
    %271 = vmatprep.subr.mxu0 0.0
    %272 = vmatpush2.msra.mxu0 %v185
    %273 = vmatprep.subr.mxu0 0.0
    %274 = vmatpush2.msra.mxu0 %v184
    %275 = vmatprep.subr.mxu0 0.0
    %276 = vmatpush2.msra.mxu0 %v183
    %277 = vmatprep.subr.mxu0 0.0
    %278 = vmatpush2.msra.mxu0 %v182
    %279 = vmatprep.subr.mxu0 0.0
    %280 = vmatpush2.msra.mxu0 %v181
    %281 = vmatprep.subr.mxu0 0.0
    %282 = vmatpush2.msra.mxu0 %v180
    %283 = vmatprep.subr.mxu0 0.0
    %284 = vmatpush2.msra.mxu0 %v179
    %285 = vmatprep.subr.mxu0 0.0
    %286 = vmatpush2.msra.mxu0 %v178
    %287 = vmatprep.subr.mxu0 0.0
    %288 = vmatpush2.msra.mxu0 %v177
    %289 = vmatprep.mubr.f32.mxu0 %v158
    %290 = vmatmul.mubr.f32.gmra.mxu0 %v157
    %v291 = vpop.f32.mrf.mxu0
    %v292 = vadd.f32 0.0, %v291
    %v293 = vpop.f32.mrf.mxu0
    %294 = vdwg.mxu0
    %295 = vmatprep.subr.mxu0 0.0
    %296 = vmatpush1.msra.mxu0 %v208
    %297 = vmatprep.subr.mxu0 0.0
    %298 = vmatpush1.msra.mxu0 %v207
    %299 = vmatprep.subr.mxu0 0.0
    %300 = vmatpush1.msra.mxu0 %v206
    %301 = vmatprep.subr.mxu0 0.0
    %302 = vmatpush1.msra.mxu0 %v205
    %303 = vmatprep.subr.mxu0 0.0
    %304 = vmatpush1.msra.mxu0 %v204
    %305 = vmatprep.subr.mxu0 0.0
    %306 = vmatpush1.msra.mxu0 %v203
    %307 = vmatprep.subr.mxu0 0.0
    %308 = vmatpush1.msra.mxu0 %v202
    %309 = vmatprep.subr.mxu0 0.0
    %310 = vmatpush1.msra.mxu0 %v201
    %311 = vmatprep.subr.mxu0 0.0
    %312 = vmatpush1.msra.mxu0 %v200
    %313 = vmatprep.subr.mxu0 0.0
    %314 = vmatpush1.msra.mxu0 %v199
    %315 = vmatprep.subr.mxu0 0.0
    %316 = vmatpush1.msra.mxu0 %v198
    %317 = vmatprep.subr.mxu0 0.0
    %318 = vmatpush1.msra.mxu0 %v197
    %319 = vmatprep.subr.mxu0 0.0
    %320 = vmatpush1.msra.mxu0 %v196
    %321 = vmatprep.subr.mxu0 0.0
    %322 = vmatpush1.msra.mxu0 %v195
    %323 = vmatprep.subr.mxu0 0.0
    %324 = vmatpush1.msra.mxu0 %v194
    %325 = vmatprep.subr.mxu0 0.0
    %326 = vmatpush1.msra.mxu0 %v193
    %327 = vmatprep.subr.mxu0 0.0
    %328 = vmatpush2.msra.mxu0 %v224
    %329 = vmatprep.subr.mxu0 0.0
    %330 = vmatpush2.msra.mxu0 %v223
    %331 = vmatprep.subr.mxu0 0.0
    %332 = vmatpush2.msra.mxu0 %v222
    %333 = vmatprep.subr.mxu0 0.0
    %334 = vmatpush2.msra.mxu0 %v221
    %335 = vmatprep.subr.mxu0 0.0
    %336 = vmatpush2.msra.mxu0 %v220
    %337 = vmatprep.subr.mxu0 0.0
    %338 = vmatpush2.msra.mxu0 %v219
    %339 = vmatprep.subr.mxu0 0.0
    %340 = vmatpush2.msra.mxu0 %v218
    %341 = vmatprep.subr.mxu0 0.0
    %342 = vmatpush2.msra.mxu0 %v217
    %343 = vmatprep.subr.mxu0 0.0
    %344 = vmatpush2.msra.mxu0 %v216
    %345 = vmatprep.subr.mxu0 0.0
    %346 = vmatpush2.msra.mxu0 %v215
    %347 = vmatprep.subr.mxu0 0.0
    %348 = vmatpush2.msra.mxu0 %v214
    %349 = vmatprep.subr.mxu0 0.0
    %350 = vmatpush2.msra.mxu0 %v213
    %351 = vmatprep.subr.mxu0 0.0
    %352 = vmatpush2.msra.mxu0 %v212
    %353 = vmatprep.subr.mxu0 0.0
    %354 = vmatpush2.msra.mxu0 %v211
    %355 = vmatprep.subr.mxu0 0.0
    %356 = vmatpush2.msra.mxu0 %v210
    %357 = vmatprep.subr.mxu0 0.0
    %358 = vmatpush2.msra.mxu0 %v209
    %359 = vmatprep.mubr.f32.mxu0 %v160
    %360 = vmatmul.mubr.f32.gmra.mxu0 %v159
    %v361 = vpop.f32.mrf.mxu0
    %v362 = vadd.f32 %v292, %v361
    %v363 = vpop.f32.mrf.mxu0
    %364 = vdwg.mxu0
    %365 = vst [vmem:[#allocation8] sm:$0xff] %v362
    // Predicated region
    $region18: #{tpu_custom_call.1} parent=1 // pred_check
      _
    $region19: #{tpu_custom_call.1} parent=1 // pred_check_branch
      %367 = sbr.rel (0) target = $region21
    $region20: #{tpu_custom_call.1} parent=1 // pred_region
      %s369 = ssub.s32 128, 128
      %370 = vsyncadd [#allocation5], %s369
      %s372 = sshll.u32 [#allocation8], 4
      %s373 = int_to_ptr.vmem [resolvable:$true] %s372
      %375 = dma.vmem_to_hbm [thread:$0]  %s373, 128, %s2, [#allocation5]
    $region21: #{tpu_custom_call.1} parent=1 // pred_fallthru
      _
    // Predicated region
    $region22: #{tpu_custom_call.1} parent=1 // pred_check
      _
    $region23: #{tpu_custom_call.1} parent=1 // pred_check_branch
      %377 = sbr.rel (0) target = $region25
    $region24: #{tpu_custom_call.1} parent=1 // pred_region
      %378 = dma.done [#allocation5], 128
    $region25: #{tpu_custom_call.1} parent=1 // pred_fallthru
      _
    %379 = vsyncpa [#allocation4], 1
    %380 = vsyncpa [#allocation7], 1
    %381 = vsyncpa [#allocation5], 1

</llo_original>
